<compile_context>
chip_gen: v5e
topology: v5e:2x2
jax: 0.10.0
libtpu: 0.0.40
codegen_flags: <defaults>
</compile_context>

<pallas_src>
import functools

import jax
import jax.numpy as jnp
from jax.experimental import pallas as pl
from jax.experimental.pallas import tpu as pltpu


_VMEM_LIMIT_BYTES = 48 * 1024 * 1024  # safe on v7x (64 MiB/TC) and v5e/v6e


def _round_up(x: int, m: int) -> int:
    return ((x + m - 1) // m) * m


def _pick_tile_m(n: int) -> int:
    """Row-panel tile. Prefer big panels but keep >=2 of them whenever the
    graph allows, so the 'parallel' grid axis can split across the two
    TensorCores of a v7x chip."""
    n128 = _round_up(max(n, 1), 128)
    for t in (512, 256, 128):
        if n128 >= 2 * t:
            return t
    return min(n128, 128)


def _pick_tile_k(n_pad: int, tile_m: int, f_out_pad: int) -> int:
    """Reduction-axis tile for the aggregation. The f32 accumulator is only
    tile_m x f_out_pad, so narrow-output (final) layers can afford a much
    deeper K tile to amortize per-step overhead (they are memory-bound)."""
    cap = 2048 if f_out_pad <= 128 else 1024
    for cand in (2048, 1024, 512, 256):
        if cand <= cap and cand <= n_pad and cand >= tile_m and n_pad % cand == 0:
            return cand
    return tile_m


# ---------------------------------------------------------------------------
# Kernel 1: feature transform  XW = X @ W   (bf16 inputs, f32 MXU accumulate)
# ---------------------------------------------------------------------------
def _feature_transform_kernel(x_ref, w_ref, o_ref):
    o_ref[...] = jnp.dot(
        x_ref[...], w_ref[...], preferred_element_type=jnp.float32
    ).astype(o_ref.dtype)


def feature_transform(x, w, tile_m):
    """x: [N_pad, F_in_pad] bf16, w: [F_in_pad, F_out_pad] bf16 -> bf16."""
    n_pad, f_in_pad = x.shape
    f_out_pad = w.shape[1]
    grid = (n_pad // tile_m,)
    flops = 2 * n_pad * f_in_pad * f_out_pad
    bytes_accessed = (x.size * x.dtype.itemsize
                      + w.size * w.dtype.itemsize
                      + n_pad * f_out_pad * 2)
    return pl.pallas_call(
        _feature_transform_kernel,
        out_shape=jax.ShapeDtypeStruct((n_pad, f_out_pad), jnp.bfloat16),
        grid=grid,
        in_specs=[
            pl.BlockSpec((tile_m, f_in_pad), lambda i: (i, 0)),
            pl.BlockSpec((f_in_pad, f_out_pad), lambda i: (0, 0)),
        ],
        out_specs=pl.BlockSpec((tile_m, f_out_pad), lambda i: (i, 0)),
        compiler_params=pltpu.CompilerParams(
            dimension_semantics=("parallel",),
            vmem_limit_bytes=_VMEM_LIMIT_BYTES),
        cost_estimate=pl.CostEstimate(
            flops=int(flops), transcendentals=0,
            bytes_accessed=int(bytes_accessed)),
    )(x, w)


# ---------------------------------------------------------------------------
# Kernel 2: block-sparse aggregation  out = A_hat @ XW + b  (+ReLU / log_softmax)
# ---------------------------------------------------------------------------
def _aggregate_kernel(nz_ref, effk_ref, a_ref, xw_ref, b_ref, o_ref, acc_ref, *,
                      apply_relu: bool, apply_log_softmax: bool, valid_cols: int):
    i = pl.program_id(0)
    k = pl.program_id(1)

    @pl.when(k == 0)
    def _():
        acc_ref[...] = jnp.zeros_like(acc_ref)

    # Block-sparse skip: A_hat is a graph adjacency, so most (i, k) tiles are
    # all-zero. The index_map reuses the previous nonzero block index for zero
    # tiles (no new DMA); the MXU dot is skipped here.
    @pl.when(nz_ref[i, k] > 0)
    def _():
        acc_ref[...] += jnp.dot(
            a_ref[...], xw_ref[...], preferred_element_type=jnp.float32)

    @pl.when(k == pl.num_programs(1) - 1)
    def _():
        out = acc_ref[...] + b_ref[...]           # f32 epilogue
        if apply_relu:
            out = jnp.maximum(out, 0.0)
        if apply_log_softmax:
            # mask padded class lanes so they don't pollute the softmax sum
            col = jax.lax.broadcasted_iota(jnp.int32, out.shape, 1)
            out = jnp.where(col < valid_cols, out, jnp.float32(-1e30))
            m = jnp.max(out, axis=1, keepdims=True)
            s = out - m
            lse = jnp.log(jnp.sum(jnp.exp(s), axis=1, keepdims=True))
            out = s - lse
        o_ref[...] = out.astype(o_ref.dtype)


def aggregate(nz, effk, a, xw, b, tile_m, tile_k, *, apply_relu,
              apply_log_softmax, valid_cols, out_dtype):
    """a: [N_pad, N_pad] bf16, xw: [N_pad, F_out_pad] bf16, b: [1, F_out_pad] f32.
    nz / effk: [N_pad//tile_m, N_pad//tile_k] int32 block-sparsity metadata."""
    n_pad = a.shape[0]
    f_out_pad = xw.shape[1]
    grid = (n_pad // tile_m, n_pad // tile_k)
    kernel = functools.partial(
        _aggregate_kernel,
        apply_relu=apply_relu,
        apply_log_softmax=apply_log_softmax,
        valid_cols=valid_cols,
    )
    flops = 2 * n_pad * n_pad * f_out_pad          # dense upper bound (advisory)
    transcendentals = n_pad * f_out_pad if apply_log_softmax else 0
    out_itemsize = jnp.dtype(out_dtype).itemsize
    bytes_accessed = (a.size * a.dtype.itemsize
                      + xw.size * xw.dtype.itemsize
                      + b.size * b.dtype.itemsize
                      + n_pad * f_out_pad * out_itemsize)

    grid_spec = pltpu.PrefetchScalarGridSpec(
        num_scalar_prefetch=2,
        grid=grid,
        in_specs=[
            # A tile: row panel i, effective (last nonzero) k block
            pl.BlockSpec((tile_m, tile_k),
                         lambda i, k, nz_r, effk_r: (i, effk_r[i, k])),
            # XW tile: same effective k block
            pl.BlockSpec((tile_k, f_out_pad),
                         lambda i, k, nz_r, effk_r: (effk_r[i, k], 0)),
            # bias: constant block
            pl.BlockSpec((1, f_out_pad),
                         lambda i, k, nz_r, effk_r: (0, 0)),
        ],
        out_specs=pl.BlockSpec((tile_m, f_out_pad),
                               lambda i, k, nz_r, effk_r: (i, 0)),
        scratch_shapes=[pltpu.VMEM((tile_m, f_out_pad), jnp.float32)],
    )
    return pl.pallas_call(
        kernel,
        out_shape=jax.ShapeDtypeStruct((n_pad, f_out_pad), out_dtype),
        grid_spec=grid_spec,
        compiler_params=pltpu.CompilerParams(
            dimension_semantics=("parallel", "arbitrary"),
            vmem_limit_bytes=_VMEM_LIMIT_BYTES),
        cost_estimate=pl.CostEstimate(
            flops=int(flops), transcendentals=int(transcendentals),
            bytes_accessed=int(bytes_accessed)),
    )(nz, effk, a, xw, b)


# ---------------------------------------------------------------------------
# Plain-JAX glue
# ---------------------------------------------------------------------------
def build_normalized_adjacency(edge_index, num_nodes, n_pad, dtype):
    """PyG gcn_norm semantics with add_remaining_self_loops:
    A_norm[dst, src] = deg(dst)^-1/2 * deg(src)^-1/2 * weight.
    Built at (n, n) in f32, then cast + padded directly into the kernel dtype
    (no dense f32 N_pad^2 intermediate)."""
    src = edge_index[0]
    dst = edge_index[1]
    # message flows source -> target: out[dst] += norm * x[src]
    a = jnp.zeros((num_nodes, num_nodes), jnp.float32).at[dst, src].add(1.0)
    # add self-loops only where missing (existing ones are not double counted)
    diag = jnp.diagonal(a)
    a = a + jnp.diag(jnp.where(diag == 0.0, 1.0, 0.0))
    deg = jnp.sum(a, axis=1)
    dinv = jnp.where(deg > 0.0, jax.lax.rsqrt(deg), 0.0)
    a = dinv[:, None] * a * dinv[None, :]
    out = jnp.zeros((n_pad, n_pad), dtype)
    return out.at[:num_nodes, :num_nodes].set(a.astype(dtype))


def build_block_sparsity(a_pad, tile_m, tile_k):
    """nz[i,k] = 1 iff A block (i,k) has any nonzero; effk[i,k] = index of the
    last nonzero k-block <= k (forward fill, 0 before the first nonzero) so the
    aggregation index_map keeps the block index constant over skipped steps."""
    n_pad = a_pad.shape[0]
    n_i, n_k = n_pad // tile_m, n_pad // tile_k
    blocks = a_pad.reshape(n_i, tile_m, n_k, tile_k)
    nz = jnp.any(blocks != 0, axis=(1, 3)).astype(jnp.int32)
    k_idx = jnp.broadcast_to(jnp.arange(n_k, dtype=jnp.int32)[None, :], nz.shape)
    last_nz = jax.lax.cummax(jnp.where(nz > 0, k_idx, -1), axis=1)
    effk = jnp.maximum(last_nz, 0).astype(jnp.int32)
    return nz, effk


# ---------------------------------------------------------------------------
# Module wrapper (inference mode)
# ---------------------------------------------------------------------------
class GCNPallas:
    """Pallas re-implementation of the PyTorch GCN module (inference mode)."""

    def __init__(self, num_features=2208, hidden_channels=512, num_classes=2,
                 key=None):
        if key is None:
            key = jax.random.PRNGKey(0)
        self.num_classes = num_classes
        dims = [(num_features, hidden_channels),
                (hidden_channels, hidden_channels),
                (hidden_channels, hidden_channels),
                (hidden_channels, num_classes)]
        ks = jax.random.split(key, len(dims))
        self.f_in_pad = _round_up(num_features, 128)
        # Hoisted: pad + bf16-cast weights / pad biases once at init time.
        self.weights_padded = []
        self.biases_padded = []
        self.valid_out = []
        for k, (fi, fo) in zip(ks, dims):
            scale = 1.0 / jnp.sqrt(jnp.float32(fi))
            w = jax.random.uniform(k, (fi, fo), jnp.float32, -scale, scale)
            fi_pad = _round_up(fi, 128)
            fo_pad = _round_up(fo, 128)
            w_pad = jnp.zeros((fi_pad, fo_pad), jnp.float32).at[:fi, :fo].set(w)
            self.weights_padded.append(w_pad.astype(jnp.bfloat16))
            self.biases_padded.append(jnp.zeros((1, fo_pad), jnp.float32))
            self.valid_out.append(fo)

    def __call__(self, x, edge_index, batch):
        # `batch` is unused by the reference forward pass (no pooling).
        n, f_in = x.shape

        tile_m = _pick_tile_m(n)
        n_pad = _round_up(n, tile_m)

        a_pad = build_normalized_adjacency(edge_index, n, n_pad, jnp.bfloat16)

        h = jnp.zeros((n_pad, self.f_in_pad), jnp.bfloat16)
        h = h.at[:n, :f_in].set(x.astype(jnp.bfloat16))

        sparsity = {}  # block-sparsity metadata cached per tile_k
        num_layers = len(self.weights_padded)
        for li, (w_pad, b_pad, fo) in enumerate(
                zip(self.weights_padded, self.biases_padded, self.valid_out)):
            last = (li == num_layers - 1)
            fo_pad = w_pad.shape[1]
            tile_k = _pick_tile_k(n_pad, tile_m, fo_pad)
            if tile_k not in sparsity:
                sparsity[tile_k] = build_block_sparsity(a_pad, tile_m, tile_k)
            nz, effk = sparsity[tile_k]

            # F.dropout(..., training=False) is the identity at inference time.
            xw = feature_transform(h, w_pad, tile_m)
            h = aggregate(
                nz, effk, a_pad, xw, b_pad, tile_m, tile_k,
                apply_relu=not last,
                apply_log_softmax=last,
                valid_cols=fo,
                out_dtype=jnp.float32 if last else jnp.bfloat16,
            )
        return h[:n, :self.num_classes]


if __name__ == "__main__":
    key = jax.random.PRNGKey(0)
    k_x, k_e, k_p = jax.random.split(key, 3)

    # Small, module-consistent shapes: N nodes, feature dim, hidden dim, 2 classes.
    num_nodes = 16
    num_edges = 40
    num_features = 64
    hidden_channels = 32
    num_classes = 2

    x = jax.random.normal(k_x, (num_nodes, num_features), dtype=jnp.float32)
    edge_index = jax.random.randint(k_e, (2, num_edges), 0, num_nodes, dtype=jnp.int32)
    batch = jnp.zeros((num_nodes,), dtype=jnp.int32)

    model = GCNPallas(num_features=num_features,
                      hidden_channels=hidden_channels,
                      num_classes=num_classes,
                      key=k_p)

    out = model(x, edge_index, batch)
    out = jax.block_until_ready(out)

    assert out.shape == (num_nodes, num_classes)
    # rows of log_softmax must sum (in prob space) to 1
    assert bool(jnp.allclose(jnp.sum(jnp.exp(out), axis=1), 1.0, atol=1e-5))
    print("KERNEL_OK")
</pallas_src>

<mosaic_0001>
module attributes {stable_mosaic.version = 11 : i64} {
  func.func @_feature_transform_kernel(%arg0: i32, %arg1: memref<128x128xbf16, #tpu.memory_space<vmem>>, %arg2: memref<128x128xbf16, #tpu.memory_space<vmem>>, %arg3: memref<128x128xbf16, #tpu.memory_space<vmem>>) attributes {dimension_semantics = [#tpu.dimension_semantics<parallel>], iteration_bounds = array<i64: 1>, scalar_prefetch = 0 : i64, scratch_operands = 0 : i64, tpu.core_type = #tpu.core_type<tc>, window_params = [{transform_indices = @transform_0, window_bounds = array<i64: 128, 128>}, {pipeline_mode = #tpu.pipeline_mode<synchronous>, transform_indices = @transform_1, window_bounds = array<i64: 128, 128>}, {transform_indices = @transform_2, window_bounds = array<i64: 128, 128>}]} {
    %c0 = arith.constant 0 : index
    %c0_0 = arith.constant 0 : index
    %0 = vector.load %arg1[%c0, %c0_0] : memref<128x128xbf16, #tpu.memory_space<vmem>>, vector<128x128xbf16>
    %c0_1 = arith.constant 0 : index
    %c0_2 = arith.constant 0 : index
    %1 = vector.load %arg2[%c0_1, %c0_2] : memref<128x128xbf16, #tpu.memory_space<vmem>>, vector<128x128xbf16>
    %cst = arith.constant dense<0.000000e+00> : vector<128x128xf32>
    %2 = tpu.matmul %0, %1, %cst {dimension_numbers = #tpu.dot_dimension_numbers<[1], [0], [0], [1], [0, 0, 1, 1], [], []>} : vector<128x128xbf16>, vector<128x128xbf16>, vector<128x128xf32> -> vector<128x128xf32>
    %3 = arith.truncf %2 : vector<128x128xf32> to vector<128x128xbf16>
    %c0_3 = arith.constant 0 : index
    %c0_4 = arith.constant 0 : index
    %4 = vector.load %arg3[%c0_3, %c0_4] : memref<128x128xbf16, #tpu.memory_space<vmem>>, vector<128x128xbf16>
    tpu.vector_store %arg3[%c0_3, %c0_4], %3 {strides = array<i32>} : memref<128x128xbf16, #tpu.memory_space<vmem>>, vector<128x128xbf16>,
    return
  }
  func.func @transform_0(%arg0: i32) -> (i32, i32) {
    %c0_i32 = arith.constant 0 : i32
    %c0_i32_0 = arith.constant 0 : i32
    return %arg0, %c0_i32 : i32, i32
  }
  func.func @transform_1(%arg0: i32) -> (i32, i32) {
    %c0_i32 = arith.constant 0 : i32
    %c0_i32_0 = arith.constant 0 : i32
    %c0_i32_1 = arith.constant 0 : i32
    return %c0_i32, %c0_i32_0 : i32, i32
  }
  func.func @transform_2(%arg0: i32) -> (i32, i32) {
    %c0_i32 = arith.constant 0 : i32
    %c0_i32_0 = arith.constant 0 : i32
    return %arg0, %c0_i32 : i32, i32
  }
}

</mosaic_0001>

<llo_original>
// kernel: tpu_custom_call.1
$region0: #{tpu_custom_call.1}
  #allocation0 [shape = 'u32[]', space=smem, size = 0x4, offset = 0x4, fixed_abs, tag = 'smem constant byte address 0x4 - core index']
  #allocation1 [shape = 'u32[72,128]{1,0:T(1,128)}', space=vmem, size = 0x9000, scoped, tag = 'internal scratch']
  %s0 = inlined_call_operand.hbm [shape: bf16[128,128], index: 0, kind: input, shape index: {}]
  %s1 = inlined_call_operand.hbm [shape: bf16[128,128], index: 1, kind: input, shape index: {}]
  %s2 = inlined_call_operand.hbm [shape: bf16[128,128], index: 2, kind: output, shape index: {}]
  %s3 = sld [smem:[#allocation0]]
  $region26: #{tpu_custom_call.1} parent=0
    _
  %s5 = ssub.s32 1, %s3
  %s6 = scalar_select 0, %s5, %s3
  $region1: #{tpu_custom_call.1} parent=0
    #allocation2 [shape = 'u8[32768]{0}', space=vmem, size = 0x8000, scoped, tag = 'input window, operand 0, single buffered']
    #allocation3 [shape = 's32[1]{0}', space=sflag, size = 0x4, scoped, tag = 'scoped memory for tpu_custom_call.1']
    #allocation4 [shape = 's32[1]{0}', space=sflag, size = 0x4, scoped, tag = 'scoped memory for tpu_custom_call.1']
    #allocation5 [shape = 'u8[32768]{0}', space=vmem, size = 0x8000, scoped, tag = 'input window, operand 1, single buffered']
    #allocation6 [shape = 's32[1]{0}', space=sflag, size = 0x4, scoped, tag = 'scoped memory for tpu_custom_call.1']
    #allocation7 [shape = 'u8[32768]{0}', space=vmem, size = 0x8000, scoped, tag = 'output window, operand 0, single buffered']
    %7 = vsyncpa [#allocation3], 0
    %8 = vsyncpa [#allocation6], 0
    %9 = vsyncpa [#allocation4], 0
    // Predicated region
    $region2: #{tpu_custom_call.1} parent=1 // pred_check
      _
    $region3: #{tpu_custom_call.1} parent=1 // pred_check_branch
      %11 = sbr.rel (0) target = $region5
    $region4: #{tpu_custom_call.1} parent=1 // pred_region
      %13 = vsyncadd [#allocation3], 0
      %s14 = sshll.u32 %s0, 4
      %s15 = int_to_ptr.hbm [resolvable:$true] %s14
      %s16 = sshll.u32 [#allocation2], 4
      %s17 = int_to_ptr.vmem [resolvable:$true] %s16
      %22 = dma.hbm_to_vmem [thread:$0]  %s15, 1024, %s17, [#allocation3], 64, 64, 4
    $region5: #{tpu_custom_call.1} parent=1 // pred_fallthru
      _
    // Predicated region
    $region6: #{tpu_custom_call.1} parent=1 // pred_check
      _
    $region7: #{tpu_custom_call.1} parent=1 // pred_check_branch
      %24 = sbr.rel (0) target = $region9
    $region8: #{tpu_custom_call.1} parent=1 // pred_region
      %26 = vsyncadd [#allocation6], 0
      %s27 = sshll.u32 %s1, 4
      %s28 = int_to_ptr.hbm [resolvable:$true] %s27
      %s29 = sshll.u32 [#allocation5], 4
      %s30 = int_to_ptr.vmem [resolvable:$true] %s29
      %35 = dma.hbm_to_vmem [thread:$0]  %s28, 1024, %s30, [#allocation6], 64, 64, 4
    $region9: #{tpu_custom_call.1} parent=1 // pred_fallthru
      _
    // Predicated region
    $region10: #{tpu_custom_call.1} parent=1 // pred_check
      _
    $region11: #{tpu_custom_call.1} parent=1 // pred_check_branch
      %37 = sbr.rel (0) target = $region13
    $region12: #{tpu_custom_call.1} parent=1 // pred_region
      %39 = dma.done [#allocation3], 1024
    $region13: #{tpu_custom_call.1} parent=1 // pred_fallthru
      _
    // Predicated region
    $region14: #{tpu_custom_call.1} parent=1 // pred_check
      _
    $region15: #{tpu_custom_call.1} parent=1 // pred_check_branch
      %41 = sbr.rel (0) target = $region17
    $region16: #{tpu_custom_call.1} parent=1 // pred_region
      %43 = dma.done [#allocation6], 1024
    $region17: #{tpu_custom_call.1} parent=1 // pred_fallthru
      _
    %v44 = vld [vmem:[#allocation2] sm:$0xf]
    %v45 = vld [vmem:[#allocation2 + $0x4] sm:$0xf]
    %v46 = vld [vmem:[#allocation2 + $0x8] sm:$0xf]
    %v47 = vld [vmem:[#allocation2 + $0xc] sm:$0xf]
    %v48 = vld [vmem:[#allocation2 + $0x10] sm:$0xf]
    %v49 = vld [vmem:[#allocation2 + $0x14] sm:$0xf]
    %v50 = vld [vmem:[#allocation2 + $0x18] sm:$0xf]
    %v51 = vld [vmem:[#allocation2 + $0x1c] sm:$0xf]
    %v52 = vld [vmem:[#allocation2 + $0x20] sm:$0xf]
    %v53 = vld [vmem:[#allocation2 + $0x24] sm:$0xf]
    %v54 = vld [vmem:[#allocation2 + $0x28] sm:$0xf]
    %v55 = vld [vmem:[#allocation2 + $0x2c] sm:$0xf]
    %v56 = vld [vmem:[#allocation2 + $0x30] sm:$0xf]
    %v57 = vld [vmem:[#allocation2 + $0x34] sm:$0xf]
    %v58 = vld [vmem:[#allocation2 + $0x38] sm:$0xf]
    %v59 = vld [vmem:[#allocation2 + $0x3c] sm:$0xf]
    %v60 = vld [vmem:[#allocation5] sm:$0xf]
    %v61 = vld [vmem:[#allocation5 + $0x4] sm:$0xf]
    %v62 = vld [vmem:[#allocation5 + $0x8] sm:$0xf]
    %v63 = vld [vmem:[#allocation5 + $0xc] sm:$0xf]
    %v64 = vld [vmem:[#allocation5 + $0x10] sm:$0xf]
    %v65 = vld [vmem:[#allocation5 + $0x14] sm:$0xf]
    %v66 = vld [vmem:[#allocation5 + $0x18] sm:$0xf]
    %v67 = vld [vmem:[#allocation5 + $0x1c] sm:$0xf]
    %v68 = vld [vmem:[#allocation5 + $0x20] sm:$0xf]
    %v69 = vld [vmem:[#allocation5 + $0x24] sm:$0xf]
    %v70 = vld [vmem:[#allocation5 + $0x28] sm:$0xf]
    %v71 = vld [vmem:[#allocation5 + $0x2c] sm:$0xf]
    %v72 = vld [vmem:[#allocation5 + $0x30] sm:$0xf]
    %v73 = vld [vmem:[#allocation5 + $0x34] sm:$0xf]
    %v74 = vld [vmem:[#allocation5 + $0x38] sm:$0xf]
    %v75 = vld [vmem:[#allocation5 + $0x3c] sm:$0xf]
    %v92 = vunpack.c.l.b16 %v44
    %v93 = vunpack.c.l.b16 %v45
    %v94 = vunpack.c.l.b16 %v46
    %v95 = vunpack.c.l.b16 %v47
    %v96 = vunpack.c.l.b16 %v48
    %v97 = vunpack.c.l.b16 %v49
    %v98 = vunpack.c.l.b16 %v50
    %v99 = vunpack.c.l.b16 %v51
    %v100 = vunpack.c.l.b16 %v52
    %v101 = vunpack.c.l.b16 %v53
    %v102 = vunpack.c.l.b16 %v54
    %v103 = vunpack.c.l.b16 %v55
    %v104 = vunpack.c.l.b16 %v56
    %v105 = vunpack.c.l.b16 %v57
    %v106 = vunpack.c.l.b16 %v58
    %v107 = vunpack.c.l.b16 %v59
    %v108 = vpack.c.b16 %v93, %v92
    %v109 = vpack.c.b16 %v95, %v94
    %v110 = vpack.c.b16 %v97, %v96
    %v111 = vpack.c.b16 %v99, %v98
    %v112 = vpack.c.b16 %v101, %v100
    %v113 = vpack.c.b16 %v103, %v102
    %v114 = vpack.c.b16 %v105, %v104
    %v115 = vpack.c.b16 %v107, %v106
    %v140 = vunpack.c.l.b16 %v60
    %v141 = vunpack.c.l.b16 %v61
    %v142 = vunpack.c.l.b16 %v62
    %v143 = vunpack.c.l.b16 %v63
    %v144 = vunpack.c.l.b16 %v64
    %v145 = vunpack.c.l.b16 %v65
    %v146 = vunpack.c.l.b16 %v66
    %v147 = vunpack.c.l.b16 %v67
    %v148 = vunpack.c.l.b16 %v68
    %v149 = vunpack.c.l.b16 %v69
    %v150 = vunpack.c.l.b16 %v70
    %v151 = vunpack.c.l.b16 %v71
    %v152 = vunpack.c.l.b16 %v72
    %v153 = vunpack.c.l.b16 %v73
    %v154 = vunpack.c.l.b16 %v74
    %v155 = vunpack.c.l.b16 %v75
    %v156 = vpack.c.b16 %v141, %v140
    %v157 = vpack.c.b16 %v143, %v142
    %v158 = vpack.c.b16 %v145, %v144
    %v159 = vpack.c.b16 %v147, %v146
    %v160 = vpack.c.b16 %v149, %v148
    %v161 = vpack.c.b16 %v151, %v150
    %v162 = vpack.c.b16 %v153, %v152
    %v163 = vpack.c.b16 %v155, %v154
    %172 = vmatpush.bf16.msra.mxu0 %v163
    %173 = vmatpush.bf16.msra.mxu0 %v162
    %174 = vmatpush.bf16.msra.mxu0 %v161
    %175 = vmatpush.bf16.msra.mxu0 %v160
    %176 = vmatpush.bf16.msra.mxu0 %v159
    %177 = vmatpush.bf16.msra.mxu0 %v158
    %178 = vmatpush.bf16.msra.mxu0 %v157
    %179 = vmatpush.bf16.msra.mxu0 %v156
    %180 = vmatmul.bf16.gmra.mxu0 %v108
    %v181 = vpop.f32.mrf.mxu0
    %v182 = vadd.f32 0.0, %v181
    %v183 = vpop.f32.mrf.mxu0
    %v184 = vadd.f32 0.0, %v183
    %185 = vmatmul.bf16.gmra.mxu0 %v109
    %v186 = vpop.f32.mrf.mxu0
    %v187 = vadd.f32 0.0, %v186
    %v188 = vpop.f32.mrf.mxu0
    %v189 = vadd.f32 0.0, %v188
    %190 = vmatmul.bf16.gmra.mxu0 %v110
    %v191 = vpop.f32.mrf.mxu0
    %v192 = vadd.f32 0.0, %v191
    %v193 = vpop.f32.mrf.mxu0
    %v194 = vadd.f32 0.0, %v193
    %195 = vmatmul.bf16.gmra.mxu0 %v111
    %v196 = vpop.f32.mrf.mxu0
    %v197 = vadd.f32 0.0, %v196
    %v198 = vpop.f32.mrf.mxu0
    %v199 = vadd.f32 0.0, %v198
    %200 = vmatmul.bf16.gmra.mxu0 %v112
    %v201 = vpop.f32.mrf.mxu0
    %v202 = vadd.f32 0.0, %v201
    %v203 = vpop.f32.mrf.mxu0
    %v204 = vadd.f32 0.0, %v203
    %205 = vmatmul.bf16.gmra.mxu0 %v113
    %v206 = vpop.f32.mrf.mxu0
    %v207 = vadd.f32 0.0, %v206
    %v208 = vpop.f32.mrf.mxu0
    %v209 = vadd.f32 0.0, %v208
    %210 = vmatmul.bf16.gmra.mxu0 %v114
    %v211 = vpop.f32.mrf.mxu0
    %v212 = vadd.f32 0.0, %v211
    %v213 = vpop.f32.mrf.mxu0
    %v214 = vadd.f32 0.0, %v213
    %215 = vmatmul.bf16.gmra.mxu0 %v115
    %v216 = vpop.f32.mrf.mxu0
    %v217 = vadd.f32 0.0, %v216
    %v218 = vpop.f32.mrf.mxu0
    %v219 = vadd.f32 0.0, %v218
    %220 = vdwg.mxu0
    %v221 = vpack.c.bf16 %v182, %v182
    %v222 = vpack.c.bf16 %v184, %v184
    %v223 = vpack.c.bf16 %v187, %v187
    %v224 = vpack.c.bf16 %v189, %v189
    %v225 = vpack.c.bf16 %v192, %v192
    %v226 = vpack.c.bf16 %v194, %v194
    %v227 = vpack.c.bf16 %v197, %v197
    %v228 = vpack.c.bf16 %v199, %v199
    %v229 = vpack.c.bf16 %v202, %v202
    %v230 = vpack.c.bf16 %v204, %v204
    %v231 = vpack.c.bf16 %v207, %v207
    %v232 = vpack.c.bf16 %v209, %v209
    %v233 = vpack.c.bf16 %v212, %v212
    %v234 = vpack.c.bf16 %v214, %v214
    %v235 = vpack.c.bf16 %v217, %v217
    %v236 = vpack.c.bf16 %v219, %v219
    %237 = vst [vmem:[#allocation7] sm:$0xf] %v221
    %238 = vst [vmem:[#allocation7 + $0x4] sm:$0xf] %v222
    %239 = vst [vmem:[#allocation7 + $0x8] sm:$0xf] %v223
    %240 = vst [vmem:[#allocation7 + $0xc] sm:$0xf] %v224
    %241 = vst [vmem:[#allocation7 + $0x10] sm:$0xf] %v225
    %242 = vst [vmem:[#allocation7 + $0x14] sm:$0xf] %v226
    %243 = vst [vmem:[#allocation7 + $0x18] sm:$0xf] %v227
    %244 = vst [vmem:[#allocation7 + $0x1c] sm:$0xf] %v228
    %245 = vst [vmem:[#allocation7 + $0x20] sm:$0xf] %v229
    %246 = vst [vmem:[#allocation7 + $0x24] sm:$0xf] %v230
    %247 = vst [vmem:[#allocation7 + $0x28] sm:$0xf] %v231
    %248 = vst [vmem:[#allocation7 + $0x2c] sm:$0xf] %v232
    %249 = vst [vmem:[#allocation7 + $0x30] sm:$0xf] %v233
    %250 = vst [vmem:[#allocation7 + $0x34] sm:$0xf] %v234
    %251 = vst [vmem:[#allocation7 + $0x38] sm:$0xf] %v235
    %252 = vst [vmem:[#allocation7 + $0x3c] sm:$0xf] %v236
    // Predicated region
    $region18: #{tpu_custom_call.1} parent=1 // pred_check
      _
    $region19: #{tpu_custom_call.1} parent=1 // pred_check_branch
      %254 = sbr.rel (0) target = $region21
    $region20: #{tpu_custom_call.1} parent=1 // pred_region
      %256 = vsyncadd [#allocation4], 0
      %s257 = sshll.u32 [#allocation7], 4
      %s258 = int_to_ptr.vmem [resolvable:$true] %s257
      %s259 = sshll.u32 %s2, 4
      %s260 = int_to_ptr.hbm [resolvable:$true] %s259
      %265 = dma.vmem_to_hbm [thread:$0]  %s258, 1024, %s260, [#allocation4], 64, 64, 4
    $region21: #{tpu_custom_call.1} parent=1 // pred_fallthru
      _
    // Predicated region
    $region22: #{tpu_custom_call.1} parent=1 // pred_check
      _
    $region23: #{tpu_custom_call.1} parent=1 // pred_check_branch
      %267 = sbr.rel (0) target = $region25
    $region24: #{tpu_custom_call.1} parent=1 // pred_region
      %269 = dma.done [#allocation4], 1024
    $region25: #{tpu_custom_call.1} parent=1 // pred_fallthru
      _
    %270 = vsyncpa [#allocation3], 1
    %271 = vsyncpa [#allocation6], 1
    %272 = vsyncpa [#allocation4], 1

</llo_original>
